<compile_context>
chip_gen: v6e
topology: v6e:2x2x1
jax: 0.10.0
libtpu: 0.0.40
codegen_flags: <defaults>
</compile_context>

<pallas_src>
import functools

import jax
import jax.numpy as jnp
from jax import lax
from jax.experimental import pallas as pl
from jax.experimental.pallas import tpu as pltpu

INPUT_DIM = 64
HIDDEN_DIM = 128
OUTPUT_DIM = 128
NUM_NOTES = 128
NEG_SLOPE = 0.2  # matches nn.LeakyReLU(0.2) in the PyTorch module


def _leaky_relu(x, slope=NEG_SLOPE):
    # max(x, a*x) == LeakyReLU(a) for 0 <= a < 1; 2 VALU ops vs 3 for where().
    return jnp.maximum(x, slope * x)


def _chiptunify_kernel(x_ref, notes_ref, w1_ref, w2_ref, w3e_ref, b_ref,
                       out_ref, *, fuse_note_matmul):
    # x:    (T, 64)  f32      notes: (T, 1) int32
    # w1:   (64, 128)  bf16   w2: (128, 128) bf16
    # w3e:  (256, 256) bf16 block-diagonal [[w3, 0], [0, emb]]
    # b:    (3, 128)   f32  = [b1; b2; b3]
    b = b_ref[...]

    # --- MLP (processor): bf16 operands on the MXU, f32 accumulation ---------
    x = x_ref[...].astype(jnp.bfloat16)
    h = jnp.dot(x, w1_ref[...], preferred_element_type=jnp.float32)     # (T, 128)
    h = _leaky_relu(h + b[0:1, :]).astype(jnp.bfloat16)
    h = jnp.dot(h, w2_ref[...], preferred_element_type=jnp.float32)     # (T, 128)
    h = _leaky_relu(h + b[1:2, :]).astype(jnp.bfloat16)

    # --- Embedding lookup (note_mapper) as one-hot matmul on the MXU ---------
    idx = notes_ref[...]                                                # (T, 1)
    note_iota = lax.broadcasted_iota(jnp.int32, (idx.shape[0], NUM_NOTES), 1)
    one_hot = (idx == note_iota).astype(jnp.bfloat16)                   # (T, 128)

    if fuse_note_matmul:
        # Single K=256/N=256 MXU pass; the zero blocks of w3e contribute exact
        # zeros, so this is numerically identical to the two separate matmuls.
        lhs = jnp.concatenate([h, one_hot], axis=1)                     # (T, 256)
        fused = jnp.dot(lhs, w3e_ref[...],
                        preferred_element_type=jnp.float32)             # (T, 256)
        voice_feat = fused[:, :OUTPUT_DIM] + b[2:3, :]
        note_feat = fused[:, OUTPUT_DIM:]
    else:
        # 128x128-MXU generations (<= v5): two separate N=128 matmuls.
        voice_feat = jnp.dot(h, w3e_ref[0:HIDDEN_DIM, 0:OUTPUT_DIM],
                             preferred_element_type=jnp.float32) + b[2:3, :]
        note_feat = jnp.dot(one_hot,
                            w3e_ref[HIDDEN_DIM:2 * HIDDEN_DIM,
                                    OUTPUT_DIM:2 * OUTPUT_DIM],
                            preferred_element_type=jnp.float32)

    # --- Elementwise combine --------------------------------------------------
    out_ref[...] = (voice_feat * note_feat).astype(out_ref.dtype)


def _default_fuse_note_matmul():
    """Fuse the third-Linear + embedding matmuls only on 256-wide-MXU chips."""
    try:
        kind = jax.devices()[0].device_kind.lower()
    except Exception:
        return True
    return not any(tag in kind for tag in ("v2", "v3", "v4", "v5"))


@functools.partial(jax.jit, static_argnames=("tile_rows", "fuse_note_matmul"))
def _forward_impl(voice_encoding, midi_notes, params, *, tile_rows,
                  fuse_note_matmul):
    w1, b1, w2, b2, w3, b3, emb = params
    batch, frames, input_dim = voice_encoding.shape
    n = batch * frames

    x = voice_encoding.reshape(n, input_dim).astype(jnp.float32)
    notes = midi_notes.reshape(n, 1).astype(jnp.int32)
    # TODO(synk): notes block is lane-padded in VMEM ((tile,1) i32); <1% of
    # bytes so left as-is per review.

    # bf16 weights (the kernel keeps all accumulation in f32).
    w1b = w1.astype(jnp.bfloat16)
    w2b = w2.astype(jnp.bfloat16)
    w3e = jnp.zeros((2 * HIDDEN_DIM, 2 * OUTPUT_DIM), jnp.float32)
    w3e = w3e.at[:HIDDEN_DIM, :OUTPUT_DIM].set(w3)
    w3e = w3e.at[HIDDEN_DIM:, OUTPUT_DIM:].set(emb)
    w3e = w3e.astype(jnp.bfloat16)
    bpack = jnp.concatenate([b1, b2, b3], axis=0).astype(jnp.float32)   # (3, 128)

    # Row tile: large (amortize per-grid-step overhead, fill the MXU M dim),
    # multiple of 8 sublanes, and clamped to ceil(n/2) so the grid keeps >= 2
    # steps whenever possible (both v7x TensorCores get work). Partial final
    # blocks are masked by Pallas; no wrapper-side padding.
    half = ((-(-n // 2)) + 7) // 8 * 8
    tile = max(8, min((int(tile_rows) // 8) * 8, half))
    grid = (pl.cdiv(n, tile),)

    row_spec = lambda shape: pl.BlockSpec(shape, lambda i: (i, 0))
    full_spec = lambda shape: pl.BlockSpec(shape, lambda i: (0, 0))

    kernel = functools.partial(_chiptunify_kernel,
                               fuse_note_matmul=fuse_note_matmul)

    out = pl.pallas_call(
        kernel,
        out_shape=jax.ShapeDtypeStruct((n, OUTPUT_DIM), jnp.float32),
        grid_spec=pltpu.PrefetchScalarGridSpec(
            num_scalar_prefetch=0,
            grid=grid,
            in_specs=[
                row_spec((tile, input_dim)),                      # x tile
                row_spec((tile, 1)),                              # midi notes tile
                full_spec((INPUT_DIM, HIDDEN_DIM)),               # w1  (resident)
                full_spec((HIDDEN_DIM, HIDDEN_DIM)),              # w2  (resident)
                full_spec((2 * HIDDEN_DIM, 2 * OUTPUT_DIM)),      # [[w3,0],[0,emb]]
                full_spec((3, HIDDEN_DIM)),                       # b1;b2;b3
            ],
            out_specs=row_spec((tile, OUTPUT_DIM)),
        ),
        compiler_params=pltpu.CompilerParams(
            dimension_semantics=("parallel",),
            vmem_limit_bytes=32 * 1024 * 1024),
    )(x, notes, w1b, w2b, w3e, bpack)

    return out.reshape(batch, frames, OUTPUT_DIM)


def chiptunify_forward(voice_encoding, midi_notes, params, *, tile_rows=2048,
                       fuse_note_matmul=None):
    """voice_encoding: f32[batch, frames, 64], midi_notes: i32[batch, frames]."""
    if fuse_note_matmul is None:
        fuse_note_matmul = _default_fuse_note_matmul()
    return _forward_impl(voice_encoding, midi_notes, params,
                         tile_rows=int(tile_rows),
                         fuse_note_matmul=bool(fuse_note_matmul))


def init_params(key):
    """Deterministic parameter init mirroring the PyTorch module's shapes."""
    ks = jax.random.split(key, 7)
    scale = 0.05
    w1 = scale * jax.random.normal(ks[0], (INPUT_DIM, HIDDEN_DIM), jnp.float32)
    b1 = scale * jax.random.normal(ks[1], (1, HIDDEN_DIM), jnp.float32)
    w2 = scale * jax.random.normal(ks[2], (HIDDEN_DIM, HIDDEN_DIM), jnp.float32)
    b2 = scale * jax.random.normal(ks[3], (1, HIDDEN_DIM), jnp.float32)
    w3 = scale * jax.random.normal(ks[4], (HIDDEN_DIM, OUTPUT_DIM), jnp.float32)
    b3 = scale * jax.random.normal(ks[5], (1, OUTPUT_DIM), jnp.float32)
    emb = scale * jax.random.normal(ks[6], (NUM_NOTES, OUTPUT_DIM), jnp.float32)
    return (w1, b1, w2, b2, w3, b3, emb)


def reference_forward(voice_encoding, midi_notes, params):
    """Pure-JAX f32 reference of the PyTorch forward, for verification."""
    w1, b1, w2, b2, w3, b3, emb = params
    h = jnp.where(voice_encoding @ w1 + b1[0] > 0,
                  voice_encoding @ w1 + b1[0],
                  NEG_SLOPE * (voice_encoding @ w1 + b1[0]))
    h = jnp.where(h @ w2 + b2[0] > 0, h @ w2 + b2[0],
                  NEG_SLOPE * (h @ w2 + b2[0]))
    voice_feat = h @ w3 + b3[0]
    note_feat = emb[midi_notes]
    return voice_feat * note_feat


def _check(out, ref, tag):
    err = float(jnp.max(jnp.abs(out - ref)))
    scale = float(jnp.max(jnp.abs(ref)))
    # bf16-operand / f32-accum matmuls vs an f32 reference: allow a few percent
    # of the output scale.
    assert err <= 0.08 * scale + 3e-4, (
        f"mismatch vs reference ({tag}): err={err:.3e}, scale={scale:.3e}")


if __name__ == "__main__":
    key = jax.random.PRNGKey(0)
    k_params, k_voice, k_notes = jax.random.split(key, 3)
    params = init_params(k_params)

    # Small demo shape (tile clamps to 8 rows -> 2 grid steps).
    batch, frames = 2, 8
    voice_encoding = jax.random.normal(k_voice, (batch, frames, INPUT_DIM),
                                       jnp.float32)
    midi_notes = jax.random.randint(k_notes, (batch, frames), 0, NUM_NOTES,
                                    jnp.int32)
    out = jax.block_until_ready(chiptunify_forward(voice_encoding, midi_notes,
                                                   params))
    ref = reference_forward(voice_encoding, midi_notes, params)
    assert out.shape == (batch, frames, OUTPUT_DIM)
    _check(out, ref, "default path")

    # Exercise the alternate (fused / unfused) matmul path as well; both are
    # numerically equivalent, only MXU utilization differs.
    out_alt = jax.block_until_ready(chiptunify_forward(
        voice_encoding, midi_notes, params,
        fuse_note_matmul=not _default_fuse_note_matmul()))
    _check(out_alt, ref, "alternate path")

    # Multi-tile grid with a masked partial final block
    # (N = 1035 rows -> tile 520 -> 2 tiles, last one partial).
    k_v2, k_n2 = jax.random.split(jax.random.PRNGKey(1))
    batch2, frames2 = 3, 345
    voice2 = jax.random.normal(k_v2, (batch2, frames2, INPUT_DIM), jnp.float32)
    notes2 = jax.random.randint(k_n2, (batch2, frames2), 0, NUM_NOTES, jnp.int32)
    out2 = jax.block_until_ready(chiptunify_forward(voice2, notes2, params))
    ref2 = reference_forward(voice2, notes2, params)
    _check(out2, ref2, "multi-tile")

    print("KERNEL_OK")
</pallas_src>

<mosaic_0001>
module attributes {stable_mosaic.version = 11 : i64} {
  func.func @_chiptunify_kernel(%arg0: i32, %arg1: memref<8x64xf32, #tpu.memory_space<vmem>>, %arg2: memref<8x1xi32, #tpu.memory_space<vmem>>, %arg3: memref<64x128xbf16, #tpu.memory_space<vmem>>, %arg4: memref<128x128xbf16, #tpu.memory_space<vmem>>, %arg5: memref<256x256xbf16, #tpu.memory_space<vmem>>, %arg6: memref<3x128xf32, #tpu.memory_space<vmem>>, %arg7: memref<8x128xf32, #tpu.memory_space<vmem>>) attributes {dimension_semantics = [#tpu.dimension_semantics<parallel>], iteration_bounds = array<i64: 2>, scalar_prefetch = 0 : i64, scratch_operands = 0 : i64, tpu.core_type = #tpu.core_type<tc>, window_params = [{transform_indices = @transform_0, window_bounds = array<i64: 8, 64>}, {transform_indices = @transform_1, window_bounds = array<i64: 8, 1>}, {pipeline_mode = #tpu.pipeline_mode<synchronous>, transform_indices = @transform_2, window_bounds = array<i64: 64, 128>}, {pipeline_mode = #tpu.pipeline_mode<synchronous>, transform_indices = @transform_3, window_bounds = array<i64: 128, 128>}, {pipeline_mode = #tpu.pipeline_mode<synchronous>, transform_indices = @transform_4, window_bounds = array<i64: 256, 256>}, {pipeline_mode = #tpu.pipeline_mode<synchronous>, transform_indices = @transform_5, window_bounds = array<i64: 3, 128>}, {transform_indices = @transform_6, window_bounds = array<i64: 8, 128>}]} {
    %c0 = arith.constant 0 : index
    %c0_0 = arith.constant 0 : index
    %0 = vector.load %arg6[%c0, %c0_0] : memref<3x128xf32, #tpu.memory_space<vmem>>, vector<3x128xf32>
    %c0_1 = arith.constant 0 : index
    %c0_2 = arith.constant 0 : index
    %1 = vector.load %arg1[%c0_1, %c0_2] : memref<8x64xf32, #tpu.memory_space<vmem>>, vector<8x64xf32>
    %2 = arith.truncf %1 : vector<8x64xf32> to vector<8x64xbf16>
    %c0_3 = arith.constant 0 : index
    %c0_4 = arith.constant 0 : index
    %3 = vector.load %arg3[%c0_3, %c0_4] : memref<64x128xbf16, #tpu.memory_space<vmem>>, vector<64x128xbf16>
    %cst = arith.constant dense<0.000000e+00> : vector<8x128xf32>
    %4 = tpu.matmul %2, %3, %cst {dimension_numbers = #tpu.dot_dimension_numbers<[1], [0], [0], [1], [0, 0, 1, 1], [], []>} : vector<8x64xbf16>, vector<64x128xbf16>, vector<8x128xf32> -> vector<8x128xf32>
    %5 = vector.extract_strided_slice %0 {offsets = [0, 0], sizes = [1, 128], strides = [1, 1]} : vector<3x128xf32> to vector<1x128xf32>
    %6 = vector.broadcast %5 : vector<1x128xf32> to vector<8x128xf32>
    %7 = arith.addf %4, %6 : vector<8x128xf32>
    %cst_5 = arith.constant 2.000000e-01 : f32
    %8 = vector.broadcast %cst_5 : f32 to vector<8x128xf32>
    %9 = arith.mulf %8, %7 : vector<8x128xf32>
    %10 = arith.maximumf %7, %9 : vector<8x128xf32>
    %11 = arith.truncf %10 : vector<8x128xf32> to vector<8x128xbf16>
    %c0_6 = arith.constant 0 : index
    %c0_7 = arith.constant 0 : index
    %12 = vector.load %arg4[%c0_6, %c0_7] : memref<128x128xbf16, #tpu.memory_space<vmem>>, vector<128x128xbf16>
    %cst_8 = arith.constant dense<0.000000e+00> : vector<8x128xf32>
    %13 = tpu.matmul %11, %12, %cst_8 {dimension_numbers = #tpu.dot_dimension_numbers<[1], [0], [0], [1], [0, 0, 1, 1], [], []>} : vector<8x128xbf16>, vector<128x128xbf16>, vector<8x128xf32> -> vector<8x128xf32>
    %14 = vector.extract_strided_slice %0 {offsets = [1, 0], sizes = [1, 128], strides = [1, 1]} : vector<3x128xf32> to vector<1x128xf32>
    %15 = vector.broadcast %14 : vector<1x128xf32> to vector<8x128xf32>
    %16 = arith.addf %13, %15 : vector<8x128xf32>
    %cst_9 = arith.constant 2.000000e-01 : f32
    %17 = vector.broadcast %cst_9 : f32 to vector<8x128xf32>
    %18 = arith.mulf %17, %16 : vector<8x128xf32>
    %19 = arith.maximumf %16, %18 : vector<8x128xf32>
    %20 = arith.truncf %19 : vector<8x128xf32> to vector<8x128xbf16>
    %c0_10 = arith.constant 0 : index
    %c0_11 = arith.constant 0 : index
    %21 = vector.load %arg2[%c0_10, %c0_11] : memref<8x1xi32, #tpu.memory_space<vmem>>, vector<8x1xi32>
    %22 = tpu.iota {dimensions = array<i32: 1>} : vector<8x128xi32>
    %23 = vector.broadcast %21 : vector<8x1xi32> to vector<8x128xi32>
    %24 = arith.cmpi eq, %23, %22 : vector<8x128xi32>
    %25 = arith.extui %24 : vector<8x128xi1> to vector<8x128xi32>
    %26 = arith.sitofp %25 : vector<8x128xi32> to vector<8x128xf32>
    %27 = arith.truncf %26 : vector<8x128xf32> to vector<8x128xbf16>
    %28 = tpu.concatenate %20, %27 in 1 : vector<8x128xbf16>, vector<8x128xbf16> -> vector<8x256xbf16>
    %c0_12 = arith.constant 0 : index
    %c0_13 = arith.constant 0 : index
    %29 = vector.load %arg5[%c0_12, %c0_13] : memref<256x256xbf16, #tpu.memory_space<vmem>>, vector<256x256xbf16>
    %cst_14 = arith.constant dense<0.000000e+00> : vector<8x256xf32>
    %30 = tpu.matmul %28, %29, %cst_14 {dimension_numbers = #tpu.dot_dimension_numbers<[1], [0], [0], [1], [0, 0, 1, 1], [], []>} : vector<8x256xbf16>, vector<256x256xbf16>, vector<8x256xf32> -> vector<8x256xf32>
    %31 = vector.extract_strided_slice %30 {offsets = [0, 0], sizes = [8, 128], strides = [1, 1]} : vector<8x256xf32> to vector<8x128xf32>
    %32 = vector.extract_strided_slice %0 {offsets = [2, 0], sizes = [1, 128], strides = [1, 1]} : vector<3x128xf32> to vector<1x128xf32>
    %33 = vector.broadcast %32 : vector<1x128xf32> to vector<8x128xf32>
    %34 = arith.addf %31, %33 : vector<8x128xf32>
    %35 = vector.extract_strided_slice %30 {offsets = [0, 128], sizes = [8, 128], strides = [1, 1]} : vector<8x256xf32> to vector<8x128xf32>
    %36 = arith.mulf %34, %35 : vector<8x128xf32>
    %c0_15 = arith.constant 0 : index
    %c0_16 = arith.constant 0 : index
    %37 = vector.load %arg7[%c0_15, %c0_16] : memref<8x128xf32, #tpu.memory_space<vmem>>, vector<8x128xf32>
    tpu.vector_store %arg7[%c0_15, %c0_16], %36 {strides = array<i32>} : memref<8x128xf32, #tpu.memory_space<vmem>>, vector<8x128xf32>,
    return
  }
  func.func @transform_0(%arg0: i32) -> (i32, i32) {
    %c0_i32 = arith.constant 0 : i32
    %c0_i32_0 = arith.constant 0 : i32
    return %arg0, %c0_i32 : i32, i32
  }
  func.func @transform_1(%arg0: i32) -> (i32, i32) {
    %c0_i32 = arith.constant 0 : i32
    %c0_i32_0 = arith.constant 0 : i32
    return %arg0, %c0_i32 : i32, i32
  }
  func.func @transform_2(%arg0: i32) -> (i32, i32) {
    %c0_i32 = arith.constant 0 : i32
    %c0_i32_0 = arith.constant 0 : i32
    %c0_i32_1 = arith.constant 0 : i32
    return %c0_i32, %c0_i32_0 : i32, i32
  }
  func.func @transform_3(%arg0: i32) -> (i32, i32) {
    %c0_i32 = arith.constant 0 : i32
    %c0_i32_0 = arith.constant 0 : i32
    %c0_i32_1 = arith.constant 0 : i32
    return %c0_i32, %c0_i32_0 : i32, i32
  }
  func.func @transform_4(%arg0: i32) -> (i32, i32) {
    %c0_i32 = arith.constant 0 : i32
    %c0_i32_0 = arith.constant 0 : i32
    %c0_i32_1 = arith.constant 0 : i32
    return %c0_i32, %c0_i32_0 : i32, i32
  }
  func.func @transform_5(%arg0: i32) -> (i32, i32) {
    %c0_i32 = arith.constant 0 : i32
    %c0_i32_0 = arith.constant 0 : i32
    %c0_i32_1 = arith.constant 0 : i32
    return %c0_i32, %c0_i32_0 : i32, i32
  }
  func.func @transform_6(%arg0: i32) -> (i32, i32) {
    %c0_i32 = arith.constant 0 : i32
    %c0_i32_0 = arith.constant 0 : i32
    return %arg0, %c0_i32 : i32, i32
  }
}

</mosaic_0001>

<llo_original>
// kernel: _forward_impl.1
$region0: #{_forward_impl.1}
  #allocation0 [shape = 'u32[]', space=smem, size = 0x4, offset = 0x4, fixed_abs, tag = 'smem constant byte address 0x4 - core index']
  #allocation1 [shape = 'u32[144,128]{1,0:T(1,128)}', space=vmem, size = 0x12000, scoped, tag = 'internal scratch']
  %s0 = inlined_call_operand.vmem [shape: f32[16,64], index: 0, kind: input, shape index: {}]
  %s1 = inlined_call_operand.vmem [shape: s32[16,1], index: 1, kind: input, shape index: {}]
  %s2 = inlined_call_operand.vmem [shape: bf16[64,128], index: 2, kind: input, shape index: {}]
  %s3 = inlined_call_operand.vmem [shape: bf16[128,128], index: 3, kind: input, shape index: {}]
  %s4 = inlined_call_operand.vmem [shape: bf16[256,256], index: 4, kind: input, shape index: {}]
  %s5 = inlined_call_operand.vmem [shape: f32[3,128], index: 5, kind: input, shape index: {}]
  %s6 = inlined_call_operand.hbm [shape: f32[16,128], index: 6, kind: output, shape index: {}]
  %s7 = sld [smem:[#allocation0]]
  $region57: #{_forward_impl.1} parent=0
    _
  %s9 = ssub.s32 1, %s7
  %s10 = scalar_select 0, %s9, %s7
  $region1: #{_forward_impl.1} parent=0
    #allocation2 [shape = 'u8[8192]{0}', space=vmem, size = 0x2000, scoped, tag = 'output window, operand 0']
    #allocation3 [shape = 's32[2]{0}', space=sflag, size = 0x8, scoped, tag = 'scoped memory for _forward_impl.1']
    %11 = vsyncpa [#allocation3], 0
    %s12 = scalar_lea.sflag [#allocation3], 1
    %13 = vsyncpa %s12, 0
    loop: start=0, step=1, limit=4
    $region2: #{_forward_impl.1} parent=1 // loop_pre_header
      _
    $region3: #{_forward_impl.1} parent=1 // loop_header
      %s15 = sphi 0, %s19
      %p16 = scmp.ge.s32.totalorder %s15, 4
      %s25 = sphi 0, %s27
      %s28 = sphi 0, %s25
      %s29 = sphi 0, %s28
      %s45 = sphi 0, %s29
      %s51 = sphi 0, %s53
      %s54 = sphi 0, %s51
      %s55 = sphi 0, %s54
      %s71 = sphi 0, %s55
      %s75 = sphi 0, %s75
      %s77 = sphi 0, %s75
      %s78 = sphi 0, %s77
      %s92 = sphi 0, %s78
      %s96 = sphi 0, %s96
      %s98 = sphi 0, %s96
      %s99 = sphi 0, %s98
      %s113 = sphi 0, %s99
      %s117 = sphi 0, %s117
      %s119 = sphi 0, %s117
      %s120 = sphi 0, %s119
      %s134 = sphi 0, %s120
      %s138 = sphi 0, %s138
      %s140 = sphi 0, %s138
      %s141 = sphi 0, %s140
      %s155 = sphi 0, %s141
      %s161 = sphi 0, %s163
      %s164 = sphi 0, %s161
      %s165 = sphi 0, %s164
      %s181 = sphi 0, %s165
    $region4: #{_forward_impl.1} parent=1 // loop_header_branch
      %18 = sbr.rel (%p16) target = $region8
    $region5: #{_forward_impl.1} parent=1 // loop_body
      %s20 = ssub.s32 %s15, 1
      %s21 = ssub.s32 %s15, 2
      %s22 = sadd.s32 %s15, 1
      %s23 = ssub.s32 %s15, %s22
      %p24 = scmp.eq.s32.totalorder %s23, 0
      %s26 = sadd.s32 %s25, 1
      %s27 = scalar_select %p24, %s25, %s26
      %p30 = pneg %p24
      %p31 = scmp.eq.s32.totalorder %s15, 1
      %p32 = por %p30, %p31
      %p33 = scmp.ne.s32.totalorder %s25, %s28
      %p34 = scmp.eq.s32.totalorder %s15, 0
      %p35 = por %p33, %p34
      %p36 = scmp.ne.s32.totalorder %s25, %s28
      %p37 = scmp.eq.s32.totalorder %s20, 1
      %p38 = por %p36, %p37
      %p39 = scmp.ne.s32.totalorder %s28, %s29
      %p40 = scmp.eq.s32.totalorder %s20, 0
      %p41 = por %p39, %p40
      %p42 = scmp.ne.s32.totalorder %s28, %s29
      %p43 = scmp.eq.s32.totalorder %s21, 1
      %p44 = por %p42, %p43
      %p46 = scmp.ne.s32.totalorder %s29, %s45
      %p47 = scmp.eq.s32.totalorder %s21, 0
      %p48 = por %p46, %p47
      %s49 = ssub.s32 %s15, %s22
      %p50 = scmp.eq.s32.totalorder %s49, 0
      %s52 = sadd.s32 %s51, 1
      %s53 = scalar_select %p50, %s51, %s52
      %p56 = pneg %p50
      %p57 = scmp.eq.s32.totalorder %s15, 1
      %p58 = por %p56, %p57
      %p59 = scmp.ne.s32.totalorder %s51, %s54
      %p60 = scmp.eq.s32.totalorder %s15, 0
      %p61 = por %p59, %p60
      %p62 = scmp.ne.s32.totalorder %s51, %s54
      %p63 = scmp.eq.s32.totalorder %s20, 1
      %p64 = por %p62, %p63
      %p65 = scmp.ne.s32.totalorder %s54, %s55
      %p66 = scmp.eq.s32.totalorder %s20, 0
      %p67 = por %p65, %p66
      %p68 = scmp.ne.s32.totalorder %s54, %s55
      %p69 = scmp.eq.s32.totalorder %s21, 1
      %p70 = por %p68, %p69
      %p72 = scmp.ne.s32.totalorder %s55, %s71
      %p73 = scmp.eq.s32.totalorder %s21, 0
      %p74 = por %p72, %p73
      %s76 = sadd.s32 %s75, 1
      %p79 = scmp.eq.s32.totalorder %s15, 1
      %p80 = scmp.ne.s32.totalorder %s75, %s77
      %p81 = scmp.eq.s32.totalorder %s15, 0
      %p82 = por %p80, %p81
      %p83 = scmp.ne.s32.totalorder %s75, %s77
      %p84 = scmp.eq.s32.totalorder %s20, 1
      %p85 = por %p83, %p84
      %p86 = scmp.ne.s32.totalorder %s77, %s78
      %p87 = scmp.eq.s32.totalorder %s20, 0
      %p88 = por %p86, %p87
      %p89 = scmp.ne.s32.totalorder %s77, %s78
      %p90 = scmp.eq.s32.totalorder %s21, 1
      %p91 = por %p89, %p90
      %p93 = scmp.ne.s32.totalorder %s78, %s92
      %p94 = scmp.eq.s32.totalorder %s21, 0
      %p95 = por %p93, %p94
      %s97 = sadd.s32 %s96, 1
      %p100 = scmp.eq.s32.totalorder %s15, 1
      %p101 = scmp.ne.s32.totalorder %s96, %s98
      %p102 = scmp.eq.s32.totalorder %s15, 0
      %p103 = por %p101, %p102
      %p104 = scmp.ne.s32.totalorder %s96, %s98
      %p105 = scmp.eq.s32.totalorder %s20, 1
      %p106 = por %p104, %p105
      %p107 = scmp.ne.s32.totalorder %s98, %s99
      %p108 = scmp.eq.s32.totalorder %s20, 0
      %p109 = por %p107, %p108
      %p110 = scmp.ne.s32.totalorder %s98, %s99
      %p111 = scmp.eq.s32.totalorder %s21, 1
      %p112 = por %p110, %p111
      %p114 = scmp.ne.s32.totalorder %s99, %s113
      %p115 = scmp.eq.s32.totalorder %s21, 0
      %p116 = por %p114, %p115
      %s118 = sadd.s32 %s117, 1
      %p121 = scmp.eq.s32.totalorder %s15, 1
      %p122 = scmp.ne.s32.totalorder %s117, %s119
      %p123 = scmp.eq.s32.totalorder %s15, 0
      %p124 = por %p122, %p123
      %p125 = scmp.ne.s32.totalorder %s117, %s119
      %p126 = scmp.eq.s32.totalorder %s20, 1
      %p127 = por %p125, %p126
      %p128 = scmp.ne.s32.totalorder %s119, %s120
      %p129 = scmp.eq.s32.totalorder %s20, 0
      %p130 = por %p128, %p129
      %p131 = scmp.ne.s32.totalorder %s119, %s120
      %p132 = scmp.eq.s32.totalorder %s21, 1
      %p133 = por %p131, %p132
      %p135 = scmp.ne.s32.totalorder %s120, %s134
      %p136 = scmp.eq.s32.totalorder %s21, 0
      %p137 = por %p135, %p136
      %s139 = sadd.s32 %s138, 1
      %p142 = scmp.eq.s32.totalorder %s15, 1
      %p143 = scmp.ne.s32.totalorder %s138, %s140
      %p144 = scmp.eq.s32.totalorder %s15, 0
      %p145 = por %p143, %p144
      %p146 = scmp.ne.s32.totalorder %s138, %s140
      %p147 = scmp.eq.s32.totalorder %s20, 1
      %p148 = por %p146, %p147
      %p149 = scmp.ne.s32.totalorder %s140, %s141
      %p150 = scmp.eq.s32.totalorder %s20, 0
      %p151 = por %p149, %p150
      %p152 = scmp.ne.s32.totalorder %s140, %s141
      %p153 = scmp.eq.s32.totalorder %s21, 1
      %p154 = por %p152, %p153
      %p156 = scmp.ne.s32.totalorder %s141, %s155
      %p157 = scmp.eq.s32.totalorder %s21, 0
      %p158 = por %p156, %p157
      %s159 = ssub.s32 %s15, %s22
      %p160 = scmp.eq.s32.totalorder %s159, 0
      %s162 = sadd.s32 %s161, 1
      %s163 = scalar_select %p160, %s161, %s162
      %p166 = pneg %p160
      %p167 = scmp.eq.s32.totalorder %s15, 1
      %p168 = por %p166, %p167
      %p169 = scmp.ne.s32.totalorder %s161, %s164
      %p170 = scmp.eq.s32.totalorder %s15, 0
      %p171 = por %p169, %p170
      %p172 = scmp.ne.s32.totalorder %s161, %s164
      %p173 = scmp.eq.s32.totalorder %s20, 1
      %p174 = por %p172, %p173
      %p175 = scmp.ne.s32.totalorder %s164, %s165
      %p176 = scmp.eq.s32.totalorder %s20, 0
      %p177 = por %p175, %p176
      %p178 = scmp.ne.s32.totalorder %s164, %s165
      %p179 = scmp.eq.s32.totalorder %s21, 1
      %p180 = por %p178, %p179
      %p182 = scmp.ne.s32.totalorder %s165, %s181
      %p183 = scmp.eq.s32.totalorder %s21, 0
      %p184 = por %p182, %p183
      %p185 = scmp.le.s32.totalorder 1, %s15
      %p186 = scmp.lt.s32.totalorder %s15, 3
      %p187 = pnand %p185, %p186
      %p188 = pneg %p187
      // Predicated region
      $region9: #{_forward_impl.1} parent=5 // pred_check
        _
      $region10: #{_forward_impl.1} parent=5 // pred_check_branch
        %190 = sbr.rel (%p187) target = $region12
      $region11: #{_forward_impl.1} parent=5 // pred_region
        %s191 = ssub.s32 %s15, 1
        // Predicated region
        $region13: #{_forward_impl.1} parent=11 // pred_check
          %p192 = pneg %p88
        $region14: #{_forward_impl.1} parent=11 // pred_check_branch
          %194 = sbr.rel (%p192) target = $region16
        $region15: #{_forward_impl.1} parent=11 // pred_region
          _
        $region16: #{_forward_impl.1} parent=11 // pred_fallthru
          _
        // Predicated region
        $region17: #{_forward_impl.1} parent=11 // pred_check
          %p195 = pneg %p109
        $region18: #{_forward_impl.1} parent=11 // pred_check_branch
          %197 = sbr.rel (%p195) target = $region20
        $region19: #{_forward_impl.1} parent=11 // pred_region
          _
        $region20: #{_forward_impl.1} parent=11 // pred_fallthru
          _
        // Predicated region
        $region21: #{_forward_impl.1} parent=11 // pred_check
          %p198 = pneg %p130
        $region22: #{_forward_impl.1} parent=11 // pred_check_branch
          %200 = sbr.rel (%p198) target = $region24
        $region23: #{_forward_impl.1} parent=11 // pred_region
          _
        $region24: #{_forward_impl.1} parent=11 // pred_fallthru
          _
        // Predicated region
        $region25: #{_forward_impl.1} parent=11 // pred_check
          %p201 = pneg %p151
        $region26: #{_forward_impl.1} parent=11 // pred_check_branch
          %203 = sbr.rel (%p201) target = $region28
        $region27: #{_forward_impl.1} parent=11 // pred_region
          _
        $region28: #{_forward_impl.1} parent=11 // pred_fallthru
          _
      $region12: #{_forward_impl.1} parent=5 // pred_fallthru
        _
      %p204 = scmp.lt.s32.totalorder %s15, 2
      // Predicated region
      $region29: #{_forward_impl.1} parent=5 // pred_check
        %p205 = pneg %p204
      $region30: #{_forward_impl.1} parent=5 // pred_check_branch
        %207 = sbr.rel (%p205) target = $region32
      $region31: #{_forward_impl.1} parent=5 // pred_region
        // Predicated region
        $region33: #{_forward_impl.1} parent=31 // pred_check
          %p208 = pneg %p35
        $region34: #{_forward_impl.1} parent=31 // pred_check_branch
          %210 = sbr.rel (%p208) target = $region36
        $region35: #{_forward_impl.1} parent=31 // pred_region
          %p211 = scmp.lt.s32.totalorder %s15, 1
          %s212 = scalar_select %p211, %s15, 1
          %s213 = smul.addr %s212, 8
          %s214 = scalar_lea.vmem %s0, %s213
        $region36: #{_forward_impl.1} parent=31 // pred_fallthru
          _
        // Predicated region
        $region37: #{_forward_impl.1} parent=31 // pred_check
          %p215 = pneg %p61
        $region38: #{_forward_impl.1} parent=31 // pred_check_branch
          %217 = sbr.rel (%p215) target = $region40
        $region39: #{_forward_impl.1} parent=31 // pred_region
          %p218 = scmp.lt.s32.totalorder %s15, 1
          %s219 = scalar_select %p218, %s15, 1
          %s220 = smul.addr %s219, 8
          %s221 = scalar_lea.vmem %s1, %s220
        $region40: #{_forward_impl.1} parent=31 // pred_fallthru
          _
      $region32: #{_forward_impl.1} parent=5 // pred_fallthru
        _
      %p222 = scmp.le.s32.totalorder 1, %s15
      %p223 = scmp.lt.s32.totalorder %s15, 3
      %p224 = pnand %p222, %p223
      %p225 = pneg %p224
      // Predicated region
      $region41: #{_forward_impl.1} parent=5 // pred_check
        _
      $region42: #{_forward_impl.1} parent=5 // pred_check_branch
        %227 = sbr.rel (%p224) target = $region44
      $region43: #{_forward_impl.1} parent=5 // pred_region
        %s228 = ssub.s32 %s15, 1
        %p229 = scmp.lt.s32.totalorder %s20, 1
        %s230 = scalar_select %p229, %s20, 1
        %s231 = smul.addr %s230, 8
        %s232 = scalar_lea.vmem %s0, %s231
        %p233 = pneg %p41
        %p234 = pneg %p38
        %p235 = scmp.lt.s32.totalorder %s20, 1
        %s236 = scalar_select %p235, %s20, 1
        %s237 = smul.addr %s236, 8
        %s238 = scalar_lea.vmem %s1, %s237
        %p239 = pneg %p67
        %p240 = pneg %p64
        %p241 = pneg %p88
        %p242 = pneg %p85
        %p243 = pneg %p109
        %p244 = pneg %p106
        %p245 = pneg %p130
        %p246 = pneg %p127
        %p247 = pneg %p151
        %p248 = pneg %p148
        %p249 = pneg %p177
        %p250 = pneg %p174
        %s251 = sand.u32 %s164, 1
        %s252 = scalar_lea.sflag [#allocation3], %s251
        %s253 = sand.u32 %s164, 1
        %s254 = smul.addr %s253, 8
        %s255 = scalar_lea.vmem [#allocation2], %s254
        %p256 = scmp.lt.s32.totalorder %s20, 1
        %s257 = scalar_select %p256, %s20, 1
        %s258 = smul.addr %s257, 8
        %s259 = scalar_lea.vmem %s0, %s258
        %p260 = scmp.lt.s32.totalorder %s20, 1
        %s261 = scalar_select %p260, %s20, 1
        %s262 = smul.addr %s261, 8
        %s263 = scalar_lea.vmem %s1, %s262
        %v265 = vld [vmem:[%s5] sm:$0x7]
        %v266 = vld [vmem:[%s259] sm:$0xff]
        %v267 = vpack.c.bf16 %v266, %v266
        %v268 = vld [vmem:[%s2] sm:$0xf]
        %v269 = vld [vmem:[%s2 + $0x4] sm:$0xf]
        %v270 = vld [vmem:[%s2 + $0x8] sm:$0xf]
        %v271 = vld [vmem:[%s2 + $0xc] sm:$0xf]
        %v272 = vld [vmem:[%s2 + $0x10] sm:$0xf]
        %v273 = vld [vmem:[%s2 + $0x14] sm:$0xf]
        %v274 = vld [vmem:[%s2 + $0x18] sm:$0xf]
        %v275 = vld [vmem:[%s2 + $0x1c] sm:$0xf]
        %v276 = vlaneseq
        %v277 = vshrl.u32 %v276, 7
        %v278 = vsub.s32 0, %v277
        %v279 = vrot.slane %v265, %v278
        %v288 = vunpack.c.l.b16 %v268
        %v289 = vunpack.c.l.b16 %v269
        %v290 = vunpack.c.l.b16 %v270
        %v291 = vunpack.c.l.b16 %v271
        %v292 = vunpack.c.l.b16 %v272
        %v293 = vunpack.c.l.b16 %v273
        %v294 = vunpack.c.l.b16 %v274
        %v295 = vunpack.c.l.b16 %v275
        %v296 = vpack.c.b16 %v289, %v288
        %v297 = vpack.c.b16 %v291, %v290
        %v298 = vpack.c.b16 %v293, %v292
        %v299 = vpack.c.b16 %v295, %v294
        %vm304 = vcmask 523264
        %v306 = vsel %vm304, %v267, 0
        %308 = vmatprep.subr.bf16.mxu0 0
        %309 = vmatpush1.bf16.msra.mxu0 0
        %310 = vmatprep.subr.bf16.mxu0 0
        %311 = vmatpush1.bf16.msra.mxu0 0
        %312 = vmatprep.subr.bf16.mxu0 0
        %313 = vmatpush1.bf16.msra.mxu0 0
        %314 = vmatprep.subr.bf16.mxu0 0
        %315 = vmatpush1.bf16.msra.mxu0 0
        %316 = vmatprep.subr.bf16.mxu0 0
        %317 = vmatpush1.bf16.msra.mxu0 %v299
        %318 = vmatprep.subr.bf16.mxu0 0
        %319 = vmatpush1.bf16.msra.mxu0 %v298
        %320 = vmatprep.subr.bf16.mxu0 0
        %321 = vmatpush1.bf16.msra.mxu0 %v297
        %322 = vmatprep.subr.bf16.mxu0 0
        %323 = vmatpush1.bf16.msra.mxu0 %v296
        %324 = vmatprep.subr.bf16.mxu0 0
        %325 = vmatpush2.bf16.msra.mxu0 0
        %326 = vmatprep.subr.bf16.mxu0 0
        %327 = vmatpush2.bf16.msra.mxu0 0
        %328 = vmatprep.subr.bf16.mxu0 0
        %329 = vmatpush2.bf16.msra.mxu0 0
        %330 = vmatprep.subr.bf16.mxu0 0
        %331 = vmatpush2.bf16.msra.mxu0 0
        %332 = vmatprep.subr.bf16.mxu0 0
        %333 = vmatpush2.bf16.msra.mxu0 0
        %334 = vmatprep.subr.bf16.mxu0 0
        %335 = vmatpush2.bf16.msra.mxu0 0
        %336 = vmatprep.subr.bf16.mxu0 0
        %337 = vmatpush2.bf16.msra.mxu0 0
        %338 = vmatprep.subr.bf16.mxu0 0
        %339 = vmatpush2.bf16.msra.mxu0 0
        %340 = vmatprep.mubr.bf16.mxu0 0
        %341 = vmatmul.mubr.bf16.gmra.mxu0 %v306
        %v342 = vpop.f32.mrf.mxu0
        %v343 = vadd.f32 %v279, %v342
        %v344 = vpop.f32.mrf.mxu0
        %v345 = vpop.f32.mrf.mxu0
        %v346 = vpop.f32.mrf.mxu0
        %347 = vdwg.mxu0
        %v348 = vmul.f32 %v343, 0.2
        %v349 = vmax.f32 %v343, %v348
        %v350 = vpack.c.bf16 %v349, %v349
        %v351 = vld [vmem:[%s3] sm:$0xf]
        %v352 = vld [vmem:[%s3 + $0x4] sm:$0xf]
        %v353 = vld [vmem:[%s3 + $0x8] sm:$0xf]
        %v354 = vld [vmem:[%s3 + $0xc] sm:$0xf]
        %v355 = vld [vmem:[%s3 + $0x10] sm:$0xf]
        %v356 = vld [vmem:[%s3 + $0x14] sm:$0xf]
        %v357 = vld [vmem:[%s3 + $0x18] sm:$0xf]
        %v358 = vld [vmem:[%s3 + $0x1c] sm:$0xf]
        %v359 = vld [vmem:[%s3 + $0x20] sm:$0xf]
        %v360 = vld [vmem:[%s3 + $0x24] sm:$0xf]
        %v361 = vld [vmem:[%s3 + $0x28] sm:$0xf]
        %v362 = vld [vmem:[%s3 + $0x2c] sm:$0xf]
        %v363 = vld [vmem:[%s3 + $0x30] sm:$0xf]
        %v364 = vld [vmem:[%s3 + $0x34] sm:$0xf]
        %v365 = vld [vmem:[%s3 + $0x38] sm:$0xf]
        %v366 = vld [vmem:[%s3 + $0x3c] sm:$0xf]
        %v367 = vlaneseq
        %v368 = vshrl.u32 %v367, 7
        %v369 = vsub.s32 1, %v368
        %v370 = vrot.slane %v265, %v369
        %v387 = vunpack.c.l.b16 %v351
        %v388 = vunpack.c.l.b16 %v352
        %v389 = vunpack.c.l.b16 %v353
        %v390 = vunpack.c.l.b16 %v354
        %v391 = vunpack.c.l.b16 %v355
        %v392 = vunpack.c.l.b16 %v356
        %v393 = vunpack.c.l.b16 %v357
        %v394 = vunpack.c.l.b16 %v358
        %v395 = vunpack.c.l.b16 %v359
        %v396 = vunpack.c.l.b16 %v360
        %v397 = vunpack.c.l.b16 %v361
        %v398 = vunpack.c.l.b16 %v362
        %v399 = vunpack.c.l.b16 %v363
        %v400 = vunpack.c.l.b16 %v364
        %v401 = vunpack.c.l.b16 %v365
        %v402 = vunpack.c.l.b16 %v366
        %v403 = vpack.c.b16 %v388, %v387
        %v404 = vpack.c.b16 %v390, %v389
        %v405 = vpack.c.b16 %v392, %v391
        %v406 = vpack.c.b16 %v394, %v393
        %v407 = vpack.c.b16 %v396, %v395
        %v408 = vpack.c.b16 %v398, %v397
        %v409 = vpack.c.b16 %v400, %v399
        %v410 = vpack.c.b16 %v402, %v401
        %419 = vmatprep.subr.bf16.mxu0 0
        %420 = vmatpush1.bf16.msra.mxu0 %v410
        %421 = vmatprep.subr.bf16.mxu0 0
        %422 = vmatpush1.bf16.msra.mxu0 %v409
        %423 = vmatprep.subr.bf16.mxu0 0
        %424 = vmatpush1.bf16.msra.mxu0 %v408
        %425 = vmatprep.subr.bf16.mxu0 0
        %426 = vmatpush1.bf16.msra.mxu0 %v407
        %427 = vmatprep.subr.bf16.mxu0 0
        %428 = vmatpush1.bf16.msra.mxu0 %v406
        %429 = vmatprep.subr.bf16.mxu0 0
        %430 = vmatpush1.bf16.msra.mxu0 %v405
        %431 = vmatprep.subr.bf16.mxu0 0
        %432 = vmatpush1.bf16.msra.mxu0 %v404
        %433 = vmatprep.subr.bf16.mxu0 0
        %434 = vmatpush1.bf16.msra.mxu0 %v403
        %435 = vmatprep.subr.bf16.mxu0 0
        %436 = vmatpush2.bf16.msra.mxu0 0
        %437 = vmatprep.subr.bf16.mxu0 0
        %438 = vmatpush2.bf16.msra.mxu0 0
        %439 = vmatprep.subr.bf16.mxu0 0
        %440 = vmatpush2.bf16.msra.mxu0 0
        %441 = vmatprep.subr.bf16.mxu0 0
        %442 = vmatpush2.bf16.msra.mxu0 0
        %443 = vmatprep.subr.bf16.mxu0 0
        %444 = vmatpush2.bf16.msra.mxu0 0
        %445 = vmatprep.subr.bf16.mxu0 0
        %446 = vmatpush2.bf16.msra.mxu0 0
        %447 = vmatprep.subr.bf16.mxu0 0
        %448 = vmatpush2.bf16.msra.mxu0 0
        %449 = vmatprep.subr.bf16.mxu0 0
        %450 = vmatpush2.bf16.msra.mxu0 0
        %451 = vmatprep.mubr.bf16.mxu0 0
        %452 = vmatmul.mubr.bf16.gmra.mxu0 %v350
        %v453 = vpop.f32.mrf.mxu0
        %v454 = vadd.f32 %v370, %v453
        %v455 = vpop.f32.mrf.mxu0
        %v456 = vpop.f32.mrf.mxu0
        %v457 = vpop.f32.mrf.mxu0
        %458 = vdwg.mxu0
        %v459 = vmul.f32 %v454, 0.2
        %v460 = vmax.f32 %v454, %v459
        %v461 = vpack.c.bf16 %v460, %v460
        %v462 = vld [vmem:[%s263] sm:$0xff]
        %v463 = vlaneseq
        %v464 = vand.u32 %v463, 127
        %465 = vset.pattern.permute.xlu0 0
        %466 = vperm.xlu0 %465, %v462
        %v467 = vpop.permute.xlu0 %466
        %vm468 = vcmp.eq.s32.totalorder %v467, %v464
        %v469 = vsel %vm468, 1, 0
        %v470 = vcvt.s32.f32 %v469
        %v471 = vpack.c.bf16 %v470, %v470
        %v472 = vld [vmem:[%s4] sm:$0xff]
        %v473 = vld [vmem:[%s4 + $0x8] sm:$0xff]
        %v474 = vld [vmem:[%s4 + $0x10] sm:$0xff]
        %v475 = vld [vmem:[%s4 + $0x18] sm:$0xff]
        %v476 = vld [vmem:[%s4 + $0x20] sm:$0xff]
        %v477 = vld [vmem:[%s4 + $0x28] sm:$0xff]
        %v478 = vld [vmem:[%s4 + $0x30] sm:$0xff]
        %v479 = vld [vmem:[%s4 + $0x38] sm:$0xff]
        %v480 = vld [vmem:[%s4 + $0x40] sm:$0xff]
        %v481 = vld [vmem:[%s4 + $0x48] sm:$0xff]
        %v482 = vld [vmem:[%s4 + $0x50] sm:$0xff]
        %v483 = vld [vmem:[%s4 + $0x58] sm:$0xff]
        %v484 = vld [vmem:[%s4 + $0x60] sm:$0xff]
        %v485 = vld [vmem:[%s4 + $0x68] sm:$0xff]
        %v486 = vld [vmem:[%s4 + $0x70] sm:$0xff]
        %v487 = vld [vmem:[%s4 + $0x78] sm:$0xff]
        %v488 = vld [vmem:[%s4 + $0x80] sm:$0xff]
        %v489 = vld [vmem:[%s4 + $0x88] sm:$0xff]
        %v490 = vld [vmem:[%s4 + $0x90] sm:$0xff]
        %v491 = vld [vmem:[%s4 + $0x98] sm:$0xff]
        %v492 = vld [vmem:[%s4 + $0xa0] sm:$0xff]
        %v493 = vld [vmem:[%s4 + $0xa8] sm:$0xff]
        %v494 = vld [vmem:[%s4 + $0xb0] sm:$0xff]
        %v495 = vld [vmem:[%s4 + $0xb8] sm:$0xff]
        %v496 = vld [vmem:[%s4 + $0xc0] sm:$0xff]
        %v497 = vld [vmem:[%s4 + $0xc8] sm:$0xff]
        %v498 = vld [vmem:[%s4 + $0xd0] sm:$0xff]
        %v499 = vld [vmem:[%s4 + $0xd8] sm:$0xff]
        %v500 = vld [vmem:[%s4 + $0xe0] sm:$0xff]
        %v501 = vld [vmem:[%s4 + $0xe8] sm:$0xff]
        %v502 = vld [vmem:[%s4 + $0xf0] sm:$0xff]
        %v503 = vld [vmem:[%s4 + $0xf8] sm:$0xff]
        %v536 = vunpack.c.l.b16 %v472
        %v537 = vunpack.c.h.b16 %v472
        %v538 = vunpack.c.l.b16 %v473
        %v539 = vunpack.c.h.b16 %v473
        %v540 = vunpack.c.l.b16 %v474
        %v541 = vunpack.c.h.b16 %v474
        %v542 = vunpack.c.l.b16 %v475
        %v543 = vunpack.c.h.b16 %v475
        %v544 = vunpack.c.l.b16 %v476
        %v545 = vunpack.c.h.b16 %v476
        %v546 = vunpack.c.l.b16 %v477
        %v547 = vunpack.c.h.b16 %v477
        %v548 = vunpack.c.l.b16 %v478
        %v549 = vunpack.c.h.b16 %v478
        %v550 = vunpack.c.l.b16 %v479
        %v551 = vunpack.c.h.b16 %v479
        %v552 = vunpack.c.l.b16 %v480
        %v553 = vunpack.c.h.b16 %v480
        %v554 = vunpack.c.l.b16 %v481
        %v555 = vunpack.c.h.b16 %v481
        %v556 = vunpack.c.l.b16 %v482
        %v557 = vunpack.c.h.b16 %v482
        %v558 = vunpack.c.l.b16 %v483
        %v559 = vunpack.c.h.b16 %v483
        %v560 = vunpack.c.l.b16 %v484
        %v561 = vunpack.c.h.b16 %v484
        %v562 = vunpack.c.l.b16 %v485
        %v563 = vunpack.c.h.b16 %v485
        %v564 = vunpack.c.l.b16 %v486
        %v565 = vunpack.c.h.b16 %v486
        %v566 = vunpack.c.l.b16 %v487
        %v567 = vunpack.c.h.b16 %v487
        %v568 = vunpack.c.l.b16 %v488
        %v569 = vunpack.c.h.b16 %v488
        %v570 = vunpack.c.l.b16 %v489
        %v571 = vunpack.c.h.b16 %v489
        %v572 = vunpack.c.l.b16 %v490
        %v573 = vunpack.c.h.b16 %v490
        %v574 = vunpack.c.l.b16 %v491
        %v575 = vunpack.c.h.b16 %v491
        %v576 = vunpack.c.l.b16 %v492
        %v577 = vunpack.c.h.b16 %v492
        %v578 = vunpack.c.l.b16 %v493
        %v579 = vunpack.c.h.b16 %v493
        %v580 = vunpack.c.l.b16 %v494
        %v581 = vunpack.c.h.b16 %v494
        %v582 = vunpack.c.l.b16 %v495
        %v583 = vunpack.c.h.b16 %v495
        %v584 = vunpack.c.l.b16 %v496
        %v585 = vunpack.c.h.b16 %v496
        %v586 = vunpack.c.l.b16 %v497
        %v587 = vunpack.c.h.b16 %v497
        %v588 = vunpack.c.l.b16 %v498
        %v589 = vunpack.c.h.b16 %v498
        %v590 = vunpack.c.l.b16 %v499
        %v591 = vunpack.c.h.b16 %v499
        %v592 = vunpack.c.l.b16 %v500
        %v593 = vunpack.c.h.b16 %v500
        %v594 = vunpack.c.l.b16 %v501
        %v595 = vunpack.c.h.b16 %v501
        %v596 = vunpack.c.l.b16 %v502
        %v597 = vunpack.c.h.b16 %v502
        %v598 = vunpack.c.l.b16 %v503
        %v599 = vunpack.c.h.b16 %v503
        %v600 = vpack.c.b16 %v538, %v536
        %v601 = vpack.c.b16 %v539, %v537
        %v602 = vpack.c.b16 %v542, %v540
        %v603 = vpack.c.b16 %v543, %v541
        %v604 = vpack.c.b16 %v546, %v544
        %v605 = vpack.c.b16 %v547, %v545
        %v606 = vpack.c.b16 %v550, %v548
        %v607 = vpack.c.b16 %v551, %v549
        %v608 = vpack.c.b16 %v554, %v552
        %v609 = vpack.c.b16 %v555, %v553
        %v610 = vpack.c.b16 %v558, %v556
        %v611 = vpack.c.b16 %v559, %v557
        %v612 = vpack.c.b16 %v562, %v560
        %v613 = vpack.c.b16 %v563, %v561
        %v614 = vpack.c.b16 %v566, %v564
        %v615 = vpack.c.b16 %v567, %v565
        %v616 = vpack.c.b16 %v570, %v568
        %v617 = vpack.c.b16 %v571, %v569
        %v618 = vpack.c.b16 %v574, %v572
        %v619 = vpack.c.b16 %v575, %v573
        %v620 = vpack.c.b16 %v578, %v576
        %v621 = vpack.c.b16 %v579, %v577
        %v622 = vpack.c.b16 %v582, %v580
        %v623 = vpack.c.b16 %v583, %v581
        %v624 = vpack.c.b16 %v586, %v584
        %v625 = vpack.c.b16 %v587, %v585
        %v626 = vpack.c.b16 %v590, %v588
        %v627 = vpack.c.b16 %v591, %v589
        %v628 = vpack.c.b16 %v594, %v592
        %v629 = vpack.c.b16 %v595, %v593
        %v630 = vpack.c.b16 %v598, %v596
        %v631 = vpack.c.b16 %v599, %v597
        %664 = vmatprep.subr.bf16.mxu0 %v615
        %665 = vmatpush1.bf16.msra.mxu0 %v614
        %666 = vmatprep.subr.bf16.mxu0 %v613
        %667 = vmatpush1.bf16.msra.mxu0 %v612
        %668 = vmatprep.subr.bf16.mxu0 %v611
        %669 = vmatpush1.bf16.msra.mxu0 %v610
        %670 = vmatprep.subr.bf16.mxu0 %v609
        %671 = vmatpush1.bf16.msra.mxu0 %v608
        %672 = vmatprep.subr.bf16.mxu0 %v607
        %673 = vmatpush1.bf16.msra.mxu0 %v606
        %674 = vmatprep.subr.bf16.mxu0 %v605
        %675 = vmatpush1.bf16.msra.mxu0 %v604
        %676 = vmatprep.subr.bf16.mxu0 %v603
        %677 = vmatpush1.bf16.msra.mxu0 %v602
        %678 = vmatprep.subr.bf16.mxu0 %v601
        %679 = vmatpush1.bf16.msra.mxu0 %v600
        %680 = vmatprep.subr.bf16.mxu0 %v631
        %681 = vmatpush2.bf16.msra.mxu0 %v630
        %682 = vmatprep.subr.bf16.mxu0 %v629
        %683 = vmatpush2.bf16.msra.mxu0 %v628
        %684 = vmatprep.subr.bf16.mxu0 %v627
        %685 = vmatpush2.bf16.msra.mxu0 %v626
        %686 = vmatprep.subr.bf16.mxu0 %v625
        %687 = vmatpush2.bf16.msra.mxu0 %v624
        %688 = vmatprep.subr.bf16.mxu0 %v623
        %689 = vmatpush2.bf16.msra.mxu0 %v622
        %690 = vmatprep.subr.bf16.mxu0 %v621
        %691 = vmatpush2.bf16.msra.mxu0 %v620
        %692 = vmatprep.subr.bf16.mxu0 %v619
        %693 = vmatpush2.bf16.msra.mxu0 %v618
        %694 = vmatprep.subr.bf16.mxu0 %v617
        %695 = vmatpush2.bf16.msra.mxu0 %v616
        %696 = vmatprep.mubr.bf16.mxu0 %v471
        %697 = vmatmul.mubr.bf16.gmra.mxu0 %v461
        %v698 = vpop.f32.mrf.mxu0
        %v699 = vadd.f32 0.0, %v698
        %v700 = vpop.f32.mrf.mxu0
        %v701 = vadd.f32 0.0, %v700
        %v702 = vpop.f32.mrf.mxu0
        %v703 = vpop.f32.mrf.mxu0
        %704 = vdwg.mxu0
        %v705 = vlaneseq
        %v706 = vshrl.u32 %v705, 7
        %v707 = vsub.s32 2, %v706
        %v708 = vrot.slane %v265, %v707
        %v709 = vadd.f32 %v699, %v708
        %v710 = vmul.f32 %v709, %v701
        %711 = vst [vmem:[%s255] sm:$0xff] %v710
        %s712 = sand.u32 %s164, 1
        %s713 = scalar_lea.sflag [#allocation3], %s712
        %s714 = sand.u32 %s164, 1
        %s715 = smul.addr %s714, 8
        %s716 = scalar_lea.vmem [#allocation2], %s715
        // Predicated region
        $region45: #{_forward_impl.1} parent=43 // pred_check
          %p717 = pneg %p174
        $region46: #{_forward_impl.1} parent=43 // pred_check_branch
          %719 = sbr.rel (%p717) target = $region48
        $region47: #{_forward_impl.1} parent=43 // pred_region
          %s721 = ssub.s32 128, 128
          %722 = vsyncadd %s713, %s721
          %s723 = smul.addr %s20, 128
          %s724 = scalar_lea.hbm %s6, %s723
          %s726 = sshll.u32 %s716, 4
          %s727 = int_to_ptr.vmem [resolvable:$true] %s726
          %729 = dma.vmem_to_hbm [thread:$0]  %s727, 128, %s724, %s713
        $region48: #{_forward_impl.1} parent=43 // pred_fallthru
          _
      $region44: #{_forward_impl.1} parent=5 // pred_fallthru
        _
      %p730 = scmp.le.s32.totalorder 2, %s15
      // Predicated region
      $region49: #{_forward_impl.1} parent=5 // pred_check
        %p731 = pneg %p730
      $region50: #{_forward_impl.1} parent=5 // pred_check_branch
        %733 = sbr.rel (%p731) target = $region52
      $region51: #{_forward_impl.1} parent=5 // pred_region
        %s734 = ssub.s32 %s15, 2
        // Predicated region
        $region53: #{_forward_impl.1} parent=51 // pred_check
          %p735 = pneg %p180
        $region54: #{_forward_impl.1} parent=51 // pred_check_branch
          %737 = sbr.rel (%p735) target = $region56
        $region55: #{_forward_impl.1} parent=51 // pred_region
          %s738 = sand.u32 %s165, 1
          %s739 = scalar_lea.sflag [#allocation3], %s738
          %s740 = sand.u32 %s165, 1
          %s741 = smul.addr %s740, 8
          %s742 = scalar_lea.vmem [#allocation2], %s741
          %743 = dma.done %s739, 128
        $region56: #{_forward_impl.1} parent=51 // pred_fallthru
          _
      $region52: #{_forward_impl.1} parent=5 // pred_fallthru
        _
    $region6: #{_forward_impl.1} parent=1 // loop_footer
      %s19 = sadd.s32 1, %s15
    $region7: #{_forward_impl.1} parent=1 // loop_footer_branch
      %14 = sbr.rel target = $region3
    $region8: #{_forward_impl.1} parent=1 // loop_exit
      _
    %744 = vsyncpa [#allocation3], 1
    %s745 = scalar_lea.sflag [#allocation3], 1
    %746 = vsyncpa %s745, 1

</llo_original>
